<compile_context>
chip_gen: v5e
topology: v5e:2x2
jax: 0.10.0
libtpu: 0.0.40
codegen_flags: <defaults>
</compile_context>

<pallas_src>
import functools
import math

import jax
import jax.numpy as jnp
from jax.experimental import pallas as pl
from jax.experimental.pallas import tpu as pltpu


def _mha_kernel(x_ref, w_qkv_ref, b_qkv_ref, wo_ref, bo_ref, o_ref, ctx_ref,
                *, heads: int):
    # x_ref: (T, E) tile for one batch element (batch dim squeezed by BlockSpec).
    T, E = x_ref.shape
    pd = E // heads

    x = x_ref[...].astype(jnp.bfloat16)                      # bf16 MXU operand

    # Fused Q/K/V projection: ONE (T, E) @ (E, 3E) MXU matmul, f32 accumulation.
    # The 1/sqrt(E) attention scale is already folded into the Q block of
    # w_qkv / b_qkv by the wrapper.
    qkv = jnp.dot(x, w_qkv_ref[...],
                  preferred_element_type=jnp.float32) + b_qkv_ref[...]
    q = qkv[:, 0 * E:1 * E]
    k = qkv[:, 1 * E:2 * E]
    v = qkv[:, 2 * E:3 * E]

    # Per-head attention (static unrolled loop, static lane slices). Each head's
    # (T, pd) result is written directly into the (T, E) VMEM scratch at its
    # lane slice -- no concatenate, head outputs don't stay live across heads.
    for h in range(heads):
        sl = slice(h * pd, (h + 1) * pd)
        qh = q[:, sl].astype(jnp.bfloat16)
        kh = k[:, sl].astype(jnp.bfloat16)
        vh = v[:, sl].astype(jnp.bfloat16)
        s = jnp.dot(qh, kh.T, preferred_element_type=jnp.float32)
        # Numerically-stable softmax; divide goes to the EUP via approx recip.
        s = s - jnp.max(s, axis=-1, keepdims=True)
        p = jnp.exp(s)
        p = p * pl.reciprocal(jnp.sum(p, axis=-1, keepdims=True), approx=True)
        ctx_ref[:, sl] = jnp.dot(p.astype(jnp.bfloat16), vh,
                                 preferred_element_type=jnp.float32)

    # Output projection Linear(E, E): one lane-dense (T, E) @ (E, E) matmul.
    ctx = ctx_ref[...].astype(jnp.bfloat16)
    out = jnp.dot(ctx, wo_ref[...],
                  preferred_element_type=jnp.float32) + bo_ref[...]
    o_ref[...] = out.astype(o_ref.dtype)


def multi_head_attention_forward(x, Wq, bq, Wk, bk, Wv, bv, Wo, bo, *, heads: int):
    """x: (B, T, E). Wq/Wk/Wv: (pd, pd) shared across heads; Wo: (E, E).
    Weights follow the torch.nn.Linear convention: y = x @ W.T + b."""
    B, T, E = x.shape
    pd = E // heads
    assert pd * heads == E, "embed_size must be divisible by heads"

    scale = 1.0 / math.sqrt(E)   # spec divides by embed_size ** 0.5

    def head_block_diag(W):
        # block_diag([W.T] * heads): (x @ BD)[:, h*pd:(h+1)*pd] ==
        # x[:, h*pd:(h+1)*pd] @ W.T  -> the shared per-head Linear.
        return jnp.kron(jnp.eye(heads, dtype=jnp.float32), W.T.astype(jnp.float32))

    # Fold the attention scale into Q at weight-prep time; fuse Q|K|V into one
    # (E, 3E) weight and one (1, 3E) bias. Weights in bf16 (MXU-native), biases
    # stay f32 (added to the f32 accumulator).
    w_qkv = jnp.concatenate(
        [head_block_diag(Wq) * scale, head_block_diag(Wk), head_block_diag(Wv)],
        axis=1).astype(jnp.bfloat16)                               # (E, 3E)
    b_qkv = jnp.concatenate(
        [jnp.tile(bq, heads) * scale, jnp.tile(bk, heads), jnp.tile(bv, heads)]
    ).reshape(1, 3 * E).astype(jnp.float32)                        # (1, 3E)
    wo_t = Wo.T.astype(jnp.bfloat16)                               # (E, E)
    bo_t = bo.reshape(1, E).astype(jnp.float32)                    # (1, E)

    kernel = functools.partial(_mha_kernel, heads=heads)

    return pl.pallas_call(
        kernel,
        out_shape=jax.ShapeDtypeStruct((B, T, E), x.dtype),
        grid_spec=pltpu.PrefetchScalarGridSpec(
            num_scalar_prefetch=0,
            grid=(B,),
            in_specs=[
                pl.BlockSpec((None, T, E), lambda b: (b, 0, 0)),   # x tile (T, E)
                # Constant block index -> DMA'd once, resident across grid steps.
                pl.BlockSpec((E, 3 * E), lambda b: (0, 0)),        # fused QKV W
                pl.BlockSpec((1, 3 * E), lambda b: (0, 0)),        # fused QKV b
                pl.BlockSpec((E, E), lambda b: (0, 0)),            # output-proj W
                pl.BlockSpec((1, E), lambda b: (0, 0)),            # output-proj b
            ],
            out_specs=pl.BlockSpec((None, T, E), lambda b: (b, 0, 0)),
            scratch_shapes=[pltpu.VMEM((T, E), jnp.float32)],      # per-head ctx
        ),
        compiler_params=pltpu.CompilerParams(
            dimension_semantics=("parallel",),
            vmem_limit_bytes=32 * 1024 * 1024,   # explicit budget (v5e/v6e/v7x-safe)
        ),
    )(x, w_qkv, b_qkv, wo_t, bo_t)


if __name__ == "__main__":
    B, T, E, H = 2, 8, 32, 4          # batch=2, seq=8, embed_size=32, heads=4
    pd = E // H

    key = jax.random.PRNGKey(0)
    keys = jax.random.split(key, 9)
    x = jax.random.normal(keys[0], (B, T, E), dtype=jnp.float32)

    s_in = 1.0 / math.sqrt(pd)
    Wq = jax.random.uniform(keys[1], (pd, pd), jnp.float32, -s_in, s_in)
    bq = jax.random.uniform(keys[2], (pd,), jnp.float32, -s_in, s_in)
    Wk = jax.random.uniform(keys[3], (pd, pd), jnp.float32, -s_in, s_in)
    bk = jax.random.uniform(keys[4], (pd,), jnp.float32, -s_in, s_in)
    Wv = jax.random.uniform(keys[5], (pd, pd), jnp.float32, -s_in, s_in)
    bv = jax.random.uniform(keys[6], (pd,), jnp.float32, -s_in, s_in)
    s_out = 1.0 / math.sqrt(E)
    Wo = jax.random.uniform(keys[7], (E, E), jnp.float32, -s_out, s_out)
    bo = jax.random.uniform(keys[8], (E,), jnp.float32, -s_out, s_out)

    out = multi_head_attention_forward(x, Wq, bq, Wk, bk, Wv, bv, Wo, bo, heads=H)
    out = jax.block_until_ready(out)

    # Pure-JAX reference matching the PyTorch forward exactly (f32).
    xh = x.reshape(B, T, H, pd)
    q = (xh @ Wq.T + bq).transpose(0, 2, 1, 3)          # (B, H, T, pd)
    k = (xh @ Wk.T + bk).transpose(0, 2, 1, 3)
    v = (xh @ Wv.T + bv).transpose(0, 2, 1, 3)
    scores = (q @ k.transpose(0, 1, 3, 2)) / math.sqrt(E)
    attn = jax.nn.softmax(scores, axis=-1)
    ref = (attn @ v).transpose(0, 2, 1, 3).reshape(B, T, E)
    ref = ref @ Wo.T + bo

    assert out.shape == (B, T, E)
    # Tolerance covers bf16 MXU operands (f32 accumulation) vs the f32 reference.
    assert jnp.allclose(out, ref, atol=3e-2, rtol=3e-2), (
        "mismatch vs reference; max abs diff = "
        f"{float(jnp.max(jnp.abs(out - ref)))}")

    print("KERNEL_OK")
</pallas_src>

<mosaic_0001>
module attributes {stable_mosaic.version = 11 : i64} {
  func.func @_mha_kernel(%arg0: i32, %arg1: memref<1x8x32xf32, #tpu.memory_space<vmem>>, %arg2: memref<32x96xbf16, #tpu.memory_space<vmem>>, %arg3: memref<1x96xf32, #tpu.memory_space<vmem>>, %arg4: memref<32x32xbf16, #tpu.memory_space<vmem>>, %arg5: memref<1x32xf32, #tpu.memory_space<vmem>>, %arg6: memref<1x8x32xf32, #tpu.memory_space<vmem>>, %arg7: memref<8x32xf32, #tpu.memory_space<vmem>>) attributes {dimension_semantics = [#tpu.dimension_semantics<parallel>], iteration_bounds = array<i64: 2>, scalar_prefetch = 0 : i64, scratch_operands = 1 : i64, tpu.core_type = #tpu.core_type<tc>, window_params = [{transform_indices = @transform_0, window_bounds = array<i64: 1, 8, 32>}, {pipeline_mode = #tpu.pipeline_mode<synchronous>, transform_indices = @transform_1, window_bounds = array<i64: 32, 96>}, {pipeline_mode = #tpu.pipeline_mode<synchronous>, transform_indices = @transform_2, window_bounds = array<i64: 1, 96>}, {pipeline_mode = #tpu.pipeline_mode<synchronous>, transform_indices = @transform_3, window_bounds = array<i64: 32, 32>}, {pipeline_mode = #tpu.pipeline_mode<synchronous>, transform_indices = @transform_4, window_bounds = array<i64: 1, 32>}, {transform_indices = @transform_5, window_bounds = array<i64: 1, 8, 32>}]} {
    %c0 = arith.constant 0 : index
    %c0_0 = arith.constant 0 : index
    %c0_1 = arith.constant 0 : index
    %0 = vector.load %arg1[%c0, %c0_0, %c0_1] : memref<1x8x32xf32, #tpu.memory_space<vmem>>, vector<1x8x32xf32>
    %1 = vector.shape_cast %0 : vector<1x8x32xf32> to vector<8x32xf32>
    %2 = arith.truncf %1 : vector<8x32xf32> to vector<8x32xbf16>
    %c0_2 = arith.constant 0 : index
    %c0_3 = arith.constant 0 : index
    %3 = vector.load %arg2[%c0_2, %c0_3] : memref<32x96xbf16, #tpu.memory_space<vmem>>, vector<32x96xbf16>
    %cst = arith.constant dense<0.000000e+00> : vector<8x96xf32>
    %4 = tpu.matmul %2, %3, %cst {dimension_numbers = #tpu.dot_dimension_numbers<[1], [0], [0], [1], [0, 0, 1, 1], [], []>} : vector<8x32xbf16>, vector<32x96xbf16>, vector<8x96xf32> -> vector<8x96xf32>
    %c0_4 = arith.constant 0 : index
    %c0_5 = arith.constant 0 : index
    %5 = vector.load %arg3[%c0_4, %c0_5] : memref<1x96xf32, #tpu.memory_space<vmem>>, vector<1x96xf32>
    %6 = vector.broadcast %5 : vector<1x96xf32> to vector<8x96xf32>
    %7 = arith.addf %4, %6 : vector<8x96xf32>
    %8 = vector.extract_strided_slice %7 {offsets = [0, 0], sizes = [8, 32], strides = [1, 1]} : vector<8x96xf32> to vector<8x32xf32>
    %9 = vector.extract_strided_slice %7 {offsets = [0, 32], sizes = [8, 32], strides = [1, 1]} : vector<8x96xf32> to vector<8x32xf32>
    %10 = vector.extract_strided_slice %7 {offsets = [0, 64], sizes = [8, 32], strides = [1, 1]} : vector<8x96xf32> to vector<8x32xf32>
    %11 = vector.extract_strided_slice %8 {offsets = [0, 0], sizes = [8, 8], strides = [1, 1]} : vector<8x32xf32> to vector<8x8xf32>
    %12 = arith.truncf %11 : vector<8x8xf32> to vector<8x8xbf16>
    %13 = vector.extract_strided_slice %9 {offsets = [0, 0], sizes = [8, 8], strides = [1, 1]} : vector<8x32xf32> to vector<8x8xf32>
    %14 = arith.truncf %13 : vector<8x8xf32> to vector<8x8xbf16>
    %15 = vector.extract_strided_slice %10 {offsets = [0, 0], sizes = [8, 8], strides = [1, 1]} : vector<8x32xf32> to vector<8x8xf32>
    %16 = arith.truncf %15 : vector<8x8xf32> to vector<8x8xbf16>
    %17 = tpu.transpose %14, [1, 0] : vector<8x8xbf16> -> vector<8x8xbf16>
    %cst_6 = arith.constant dense<0.000000e+00> : vector<8x8xf32>
    %18 = tpu.matmul %12, %17, %cst_6 {dimension_numbers = #tpu.dot_dimension_numbers<[1], [0], [0], [1], [0, 0, 1, 1], [], []>} : vector<8x8xbf16>, vector<8x8xbf16>, vector<8x8xf32> -> vector<8x8xf32>
    %cst_7 = arith.constant dense<0xFF800000> : vector<8xf32>
    %19 = vector.multi_reduction <maximumf>, %18, %cst_7 [1] : vector<8x8xf32> to vector<8xf32>
    %20 = vector.shape_cast %19 : vector<8xf32> to vector<8x1xf32>
    %21 = vector.broadcast %20 : vector<8x1xf32> to vector<8x8xf32>
    %22 = arith.subf %18, %21 : vector<8x8xf32>
    %23 = math.exp %22 : vector<8x8xf32>
    %cst_8 = arith.constant dense<0.000000e+00> : vector<8xf32>
    %24 = vector.multi_reduction <add>, %23, %cst_8 [1] : vector<8x8xf32> to vector<8xf32>
    %25 = vector.shape_cast %24 : vector<8xf32> to vector<8x1xf32>
    %26 = tpu.reciprocal %25 {approx = true} : vector<8x1xf32> -> vector<8x1xf32>
    %27 = vector.broadcast %26 : vector<8x1xf32> to vector<8x8xf32>
    %28 = arith.mulf %23, %27 : vector<8x8xf32>
    %29 = arith.truncf %28 : vector<8x8xf32> to vector<8x8xbf16>
    %cst_9 = arith.constant dense<0.000000e+00> : vector<8x8xf32>
    %30 = tpu.matmul %29, %16, %cst_9 {dimension_numbers = #tpu.dot_dimension_numbers<[1], [0], [0], [1], [0, 0, 1, 1], [], []>} : vector<8x8xbf16>, vector<8x8xbf16>, vector<8x8xf32> -> vector<8x8xf32>
    %c0_10 = arith.constant 0 : index
    %c0_11 = arith.constant 0 : index
    %31 = vector.load %arg7[%c0_10, %c0_11] : memref<8x32xf32, #tpu.memory_space<vmem>>, vector<8x8xf32>
    tpu.vector_store %arg7[%c0_10, %c0_11], %30 {strides = array<i32>} : memref<8x32xf32, #tpu.memory_space<vmem>>, vector<8x8xf32>,
    %32 = vector.extract_strided_slice %8 {offsets = [0, 8], sizes = [8, 8], strides = [1, 1]} : vector<8x32xf32> to vector<8x8xf32>
    %33 = arith.truncf %32 : vector<8x8xf32> to vector<8x8xbf16>
    %34 = vector.extract_strided_slice %9 {offsets = [0, 8], sizes = [8, 8], strides = [1, 1]} : vector<8x32xf32> to vector<8x8xf32>
    %35 = arith.truncf %34 : vector<8x8xf32> to vector<8x8xbf16>
    %36 = vector.extract_strided_slice %10 {offsets = [0, 8], sizes = [8, 8], strides = [1, 1]} : vector<8x32xf32> to vector<8x8xf32>
    %37 = arith.truncf %36 : vector<8x8xf32> to vector<8x8xbf16>
    %38 = tpu.transpose %35, [1, 0] : vector<8x8xbf16> -> vector<8x8xbf16>
    %cst_12 = arith.constant dense<0.000000e+00> : vector<8x8xf32>
    %39 = tpu.matmul %33, %38, %cst_12 {dimension_numbers = #tpu.dot_dimension_numbers<[1], [0], [0], [1], [0, 0, 1, 1], [], []>} : vector<8x8xbf16>, vector<8x8xbf16>, vector<8x8xf32> -> vector<8x8xf32>
    %cst_13 = arith.constant dense<0xFF800000> : vector<8xf32>
    %40 = vector.multi_reduction <maximumf>, %39, %cst_13 [1] : vector<8x8xf32> to vector<8xf32>
    %41 = vector.shape_cast %40 : vector<8xf32> to vector<8x1xf32>
    %42 = vector.broadcast %41 : vector<8x1xf32> to vector<8x8xf32>
    %43 = arith.subf %39, %42 : vector<8x8xf32>
    %44 = math.exp %43 : vector<8x8xf32>
    %cst_14 = arith.constant dense<0.000000e+00> : vector<8xf32>
    %45 = vector.multi_reduction <add>, %44, %cst_14 [1] : vector<8x8xf32> to vector<8xf32>
    %46 = vector.shape_cast %45 : vector<8xf32> to vector<8x1xf32>
    %47 = tpu.reciprocal %46 {approx = true} : vector<8x1xf32> -> vector<8x1xf32>
    %48 = vector.broadcast %47 : vector<8x1xf32> to vector<8x8xf32>
    %49 = arith.mulf %44, %48 : vector<8x8xf32>
    %50 = arith.truncf %49 : vector<8x8xf32> to vector<8x8xbf16>
    %cst_15 = arith.constant dense<0.000000e+00> : vector<8x8xf32>
    %51 = tpu.matmul %50, %37, %cst_15 {dimension_numbers = #tpu.dot_dimension_numbers<[1], [0], [0], [1], [0, 0, 1, 1], [], []>} : vector<8x8xbf16>, vector<8x8xbf16>, vector<8x8xf32> -> vector<8x8xf32>
    %c0_16 = arith.constant 0 : index
    %c8 = arith.constant 8 : index
    %52 = vector.load %arg7[%c0_16, %c8] : memref<8x32xf32, #tpu.memory_space<vmem>>, vector<8x8xf32>
    tpu.vector_store %arg7[%c0_16, %c8], %51 {strides = array<i32>} : memref<8x32xf32, #tpu.memory_space<vmem>>, vector<8x8xf32>,
    %53 = vector.extract_strided_slice %8 {offsets = [0, 16], sizes = [8, 8], strides = [1, 1]} : vector<8x32xf32> to vector<8x8xf32>
    %54 = arith.truncf %53 : vector<8x8xf32> to vector<8x8xbf16>
    %55 = vector.extract_strided_slice %9 {offsets = [0, 16], sizes = [8, 8], strides = [1, 1]} : vector<8x32xf32> to vector<8x8xf32>
    %56 = arith.truncf %55 : vector<8x8xf32> to vector<8x8xbf16>
    %57 = vector.extract_strided_slice %10 {offsets = [0, 16], sizes = [8, 8], strides = [1, 1]} : vector<8x32xf32> to vector<8x8xf32>
    %58 = arith.truncf %57 : vector<8x8xf32> to vector<8x8xbf16>
    %59 = tpu.transpose %56, [1, 0] : vector<8x8xbf16> -> vector<8x8xbf16>
    %cst_17 = arith.constant dense<0.000000e+00> : vector<8x8xf32>
    %60 = tpu.matmul %54, %59, %cst_17 {dimension_numbers = #tpu.dot_dimension_numbers<[1], [0], [0], [1], [0, 0, 1, 1], [], []>} : vector<8x8xbf16>, vector<8x8xbf16>, vector<8x8xf32> -> vector<8x8xf32>
    %cst_18 = arith.constant dense<0xFF800000> : vector<8xf32>
    %61 = vector.multi_reduction <maximumf>, %60, %cst_18 [1] : vector<8x8xf32> to vector<8xf32>
    %62 = vector.shape_cast %61 : vector<8xf32> to vector<8x1xf32>
    %63 = vector.broadcast %62 : vector<8x1xf32> to vector<8x8xf32>
    %64 = arith.subf %60, %63 : vector<8x8xf32>
    %65 = math.exp %64 : vector<8x8xf32>
    %cst_19 = arith.constant dense<0.000000e+00> : vector<8xf32>
    %66 = vector.multi_reduction <add>, %65, %cst_19 [1] : vector<8x8xf32> to vector<8xf32>
    %67 = vector.shape_cast %66 : vector<8xf32> to vector<8x1xf32>
    %68 = tpu.reciprocal %67 {approx = true} : vector<8x1xf32> -> vector<8x1xf32>
    %69 = vector.broadcast %68 : vector<8x1xf32> to vector<8x8xf32>
    %70 = arith.mulf %65, %69 : vector<8x8xf32>
    %71 = arith.truncf %70 : vector<8x8xf32> to vector<8x8xbf16>
    %cst_20 = arith.constant dense<0.000000e+00> : vector<8x8xf32>
    %72 = tpu.matmul %71, %58, %cst_20 {dimension_numbers = #tpu.dot_dimension_numbers<[1], [0], [0], [1], [0, 0, 1, 1], [], []>} : vector<8x8xbf16>, vector<8x8xbf16>, vector<8x8xf32> -> vector<8x8xf32>
    %c0_21 = arith.constant 0 : index
    %c16 = arith.constant 16 : index
    %73 = vector.load %arg7[%c0_21, %c16] : memref<8x32xf32, #tpu.memory_space<vmem>>, vector<8x8xf32>
    tpu.vector_store %arg7[%c0_21, %c16], %72 {strides = array<i32>} : memref<8x32xf32, #tpu.memory_space<vmem>>, vector<8x8xf32>,
    %74 = vector.extract_strided_slice %8 {offsets = [0, 24], sizes = [8, 8], strides = [1, 1]} : vector<8x32xf32> to vector<8x8xf32>
    %75 = arith.truncf %74 : vector<8x8xf32> to vector<8x8xbf16>
    %76 = vector.extract_strided_slice %9 {offsets = [0, 24], sizes = [8, 8], strides = [1, 1]} : vector<8x32xf32> to vector<8x8xf32>
    %77 = arith.truncf %76 : vector<8x8xf32> to vector<8x8xbf16>
    %78 = vector.extract_strided_slice %10 {offsets = [0, 24], sizes = [8, 8], strides = [1, 1]} : vector<8x32xf32> to vector<8x8xf32>
    %79 = arith.truncf %78 : vector<8x8xf32> to vector<8x8xbf16>
    %80 = tpu.transpose %77, [1, 0] : vector<8x8xbf16> -> vector<8x8xbf16>
    %cst_22 = arith.constant dense<0.000000e+00> : vector<8x8xf32>
    %81 = tpu.matmul %75, %80, %cst_22 {dimension_numbers = #tpu.dot_dimension_numbers<[1], [0], [0], [1], [0, 0, 1, 1], [], []>} : vector<8x8xbf16>, vector<8x8xbf16>, vector<8x8xf32> -> vector<8x8xf32>
    %cst_23 = arith.constant dense<0xFF800000> : vector<8xf32>
    %82 = vector.multi_reduction <maximumf>, %81, %cst_23 [1] : vector<8x8xf32> to vector<8xf32>
    %83 = vector.shape_cast %82 : vector<8xf32> to vector<8x1xf32>
    %84 = vector.broadcast %83 : vector<8x1xf32> to vector<8x8xf32>
    %85 = arith.subf %81, %84 : vector<8x8xf32>
    %86 = math.exp %85 : vector<8x8xf32>
    %cst_24 = arith.constant dense<0.000000e+00> : vector<8xf32>
    %87 = vector.multi_reduction <add>, %86, %cst_24 [1] : vector<8x8xf32> to vector<8xf32>
    %88 = vector.shape_cast %87 : vector<8xf32> to vector<8x1xf32>
    %89 = tpu.reciprocal %88 {approx = true} : vector<8x1xf32> -> vector<8x1xf32>
    %90 = vector.broadcast %89 : vector<8x1xf32> to vector<8x8xf32>
    %91 = arith.mulf %86, %90 : vector<8x8xf32>
    %92 = arith.truncf %91 : vector<8x8xf32> to vector<8x8xbf16>
    %cst_25 = arith.constant dense<0.000000e+00> : vector<8x8xf32>
    %93 = tpu.matmul %92, %79, %cst_25 {dimension_numbers = #tpu.dot_dimension_numbers<[1], [0], [0], [1], [0, 0, 1, 1], [], []>} : vector<8x8xbf16>, vector<8x8xbf16>, vector<8x8xf32> -> vector<8x8xf32>
    %c0_26 = arith.constant 0 : index
    %c24 = arith.constant 24 : index
    %94 = vector.load %arg7[%c0_26, %c24] : memref<8x32xf32, #tpu.memory_space<vmem>>, vector<8x8xf32>
    tpu.vector_store %arg7[%c0_26, %c24], %93 {strides = array<i32>} : memref<8x32xf32, #tpu.memory_space<vmem>>, vector<8x8xf32>,
    %c0_27 = arith.constant 0 : index
    %c0_28 = arith.constant 0 : index
    %95 = vector.load %arg7[%c0_27, %c0_28] : memref<8x32xf32, #tpu.memory_space<vmem>>, vector<8x32xf32>
    %96 = arith.truncf %95 : vector<8x32xf32> to vector<8x32xbf16>
    %c0_29 = arith.constant 0 : index
    %c0_30 = arith.constant 0 : index
    %97 = vector.load %arg4[%c0_29, %c0_30] : memref<32x32xbf16, #tpu.memory_space<vmem>>, vector<32x32xbf16>
    %cst_31 = arith.constant dense<0.000000e+00> : vector<8x32xf32>
    %98 = tpu.matmul %96, %97, %cst_31 {dimension_numbers = #tpu.dot_dimension_numbers<[1], [0], [0], [1], [0, 0, 1, 1], [], []>} : vector<8x32xbf16>, vector<32x32xbf16>, vector<8x32xf32> -> vector<8x32xf32>
    %c0_32 = arith.constant 0 : index
    %c0_33 = arith.constant 0 : index
    %99 = vector.load %arg5[%c0_32, %c0_33] : memref<1x32xf32, #tpu.memory_space<vmem>>, vector<1x32xf32>
    %100 = vector.broadcast %99 : vector<1x32xf32> to vector<8x32xf32>
    %101 = arith.addf %98, %100 : vector<8x32xf32>
    %c0_34 = arith.constant 0 : index
    %c0_35 = arith.constant 0 : index
    %c0_36 = arith.constant 0 : index
    %102 = vector.load %arg6[%c0_34, %c0_35, %c0_36] : memref<1x8x32xf32, #tpu.memory_space<vmem>>, vector<1x8x32xf32>
    %103 = vector.shape_cast %102 : vector<1x8x32xf32> to vector<8x32xf32>
    %104 = vector.shape_cast %101 : vector<8x32xf32> to vector<1x8x32xf32>
    tpu.vector_store %arg6[%c0_34, %c0_35, %c0_36], %104 {strides = array<i32>} : memref<1x8x32xf32, #tpu.memory_space<vmem>>, vector<1x8x32xf32>,
    return
  }
  func.func @transform_0(%arg0: i32) -> (i32, i32, i32) {
    %c0_i32 = arith.constant 0 : i32
    %c0_i32_0 = arith.constant 0 : i32
    %c0_i32_1 = arith.constant 0 : i32
    return %arg0, %c0_i32, %c0_i32_0 : i32, i32, i32
  }
  func.func @transform_1(%arg0: i32) -> (i32, i32) {
    %c0_i32 = arith.constant 0 : i32
    %c0_i32_0 = arith.constant 0 : i32
    %c0_i32_1 = arith.constant 0 : i32
    return %c0_i32, %c0_i32_0 : i32, i32
  }
  func.func @transform_2(%arg0: i32) -> (i32, i32) {
    %c0_i32 = arith.constant 0 : i32
    %c0_i32_0 = arith.constant 0 : i32
    %c0_i32_1 = arith.constant 0 : i32
    return %c0_i32, %c0_i32_0 : i32, i32
  }
  func.func @transform_3(%arg0: i32) -> (i32, i32) {
    %c0_i32 = arith.constant 0 : i32
    %c0_i32_0 = arith.constant 0 : i32
    %c0_i32_1 = arith.constant 0 : i32
    return %c0_i32, %c0_i32_0 : i32, i32
  }
  func.func @transform_4(%arg0: i32) -> (i32, i32) {
    %c0_i32 = arith.constant 0 : i32
    %c0_i32_0 = arith.constant 0 : i32
    %c0_i32_1 = arith.constant 0 : i32
    return %c0_i32, %c0_i32_0 : i32, i32
  }
  func.func @transform_5(%arg0: i32) -> (i32, i32, i32) {
    %c0_i32 = arith.constant 0 : i32
    %c0_i32_0 = arith.constant 0 : i32
    %c0_i32_1 = arith.constant 0 : i32
    return %arg0, %c0_i32, %c0_i32_0 : i32, i32, i32
  }
}

</mosaic_0001>

<llo_original>
// kernel: tpu_custom_call.1
$region0: #{tpu_custom_call.1}
  #allocation0 [shape = 'u32[]', space=smem, size = 0x4, offset = 0x4, fixed_abs, tag = 'smem constant byte address 0x4 - core index']
  #allocation1 [shape = 'u32[72,128]{1,0:T(1,128)}', space=vmem, size = 0x9000, scoped, tag = 'internal scratch']
  #allocation2 [shape = 'f32[8,32]{1,0:T(8,128)}', space=vmem, size = 0x1000, scoped, tag = 'scratch operand']
  %s0 = inlined_call_operand.hbm [shape: f32[2,8,32], index: 0, kind: input, shape index: {}]
  %s1 = inlined_call_operand.hbm [shape: bf16[32,96], index: 1, kind: input, shape index: {}]
  %s2 = inlined_call_operand.vmem [shape: f32[1,96], index: 2, kind: input, shape index: {}]
  %s3 = inlined_call_operand.hbm [shape: bf16[32,32], index: 3, kind: input, shape index: {}]
  %s4 = inlined_call_operand.vmem [shape: f32[1,32], index: 4, kind: input, shape index: {}]
  %s5 = inlined_call_operand.hbm [shape: f32[2,8,32], index: 5, kind: output, shape index: {}]
  %s6 = sld [smem:[#allocation0]]
  $region65: #{tpu_custom_call.1} parent=0
    _
  %s8 = ssub.s32 1, %s6
  %s9 = scalar_select 0, %s8, %s6
  $region1: #{tpu_custom_call.1} parent=0
    #allocation3 [shape = 'u8[8192]{0}', space=vmem, size = 0x2000, scoped, tag = 'input window, operand 0']
    #allocation4 [shape = 's32[2]{0}', space=sflag, size = 0x8, scoped, tag = 'scoped memory for tpu_custom_call.1']
    #allocation5 [shape = 's32[2]{0}', space=sflag, size = 0x8, scoped, tag = 'scoped memory for tpu_custom_call.1']
    #allocation6 [shape = 'u8[8192]{0}', space=vmem, size = 0x2000, scoped, tag = 'input window, operand 1, single buffered']
    #allocation7 [shape = 's32[1]{0}', space=sflag, size = 0x4, scoped, tag = 'scoped memory for tpu_custom_call.1']
    #allocation8 [shape = 'u8[8192]{0}', space=vmem, size = 0x2000, scoped, tag = 'input window, operand 3, single buffered']
    #allocation9 [shape = 'u8[8192]{0}', space=vmem, size = 0x2000, scoped, tag = 'output window, operand 0']
    %10 = vsyncpa [#allocation4], 0
    %s11 = scalar_lea.sflag [#allocation4], 1
    %12 = vsyncpa %s11, 0
    %13 = vsyncpa [#allocation7], 0
    %14 = vsyncpa [#allocation5], 0
    %s15 = scalar_lea.sflag [#allocation5], 1
    %16 = vsyncpa %s15, 0
    loop: start=0, step=1, limit=4
    $region2: #{tpu_custom_call.1} parent=1 // loop_pre_header
      _
    $region3: #{tpu_custom_call.1} parent=1 // loop_header
      %s18 = sphi 0, %s22
      %p19 = scmp.ge.s32.totalorder %s18, 4
      %s28 = sphi 0, %s30
      %s31 = sphi 0, %s28
      %s32 = sphi 0, %s31
      %s48 = sphi 0, %s32
      %s52 = sphi 0, %s52
      %s54 = sphi 0, %s52
      %s55 = sphi 0, %s54
      %s69 = sphi 0, %s55
      %s73 = sphi 0, %s73
      %s75 = sphi 0, %s73
      %s76 = sphi 0, %s75
      %s90 = sphi 0, %s76
      %s94 = sphi 0, %s94
      %s96 = sphi 0, %s94
      %s97 = sphi 0, %s96
      %s111 = sphi 0, %s97
      %s115 = sphi 0, %s115
      %s117 = sphi 0, %s115
      %s118 = sphi 0, %s117
      %s132 = sphi 0, %s118
      %s138 = sphi 0, %s140
      %s141 = sphi 0, %s138
      %s142 = sphi 0, %s141
      %s158 = sphi 0, %s142
    $region4: #{tpu_custom_call.1} parent=1 // loop_header_branch
      %21 = sbr.rel (%p19) target = $region8
    $region5: #{tpu_custom_call.1} parent=1 // loop_body
      %s23 = ssub.s32 %s18, 1
      %s24 = ssub.s32 %s18, 2
      %s25 = sadd.s32 %s18, 1
      %s26 = ssub.s32 %s18, %s25
      %p27 = scmp.eq.s32.totalorder %s26, 0
      %s29 = sadd.s32 %s28, 1
      %s30 = scalar_select %p27, %s28, %s29
      %p33 = pneg %p27
      %p34 = scmp.eq.s32.totalorder %s18, 1
      %p35 = por %p33, %p34
      %p36 = scmp.ne.s32.totalorder %s28, %s31
      %p37 = scmp.eq.s32.totalorder %s18, 0
      %p38 = por %p36, %p37
      %p39 = scmp.ne.s32.totalorder %s28, %s31
      %p40 = scmp.eq.s32.totalorder %s23, 1
      %p41 = por %p39, %p40
      %p42 = scmp.ne.s32.totalorder %s31, %s32
      %p43 = scmp.eq.s32.totalorder %s23, 0
      %p44 = por %p42, %p43
      %p45 = scmp.ne.s32.totalorder %s31, %s32
      %p46 = scmp.eq.s32.totalorder %s24, 1
      %p47 = por %p45, %p46
      %p49 = scmp.ne.s32.totalorder %s32, %s48
      %p50 = scmp.eq.s32.totalorder %s24, 0
      %p51 = por %p49, %p50
      %s53 = sadd.s32 %s52, 1
      %p56 = scmp.eq.s32.totalorder %s18, 1
      %p57 = scmp.ne.s32.totalorder %s52, %s54
      %p58 = scmp.eq.s32.totalorder %s18, 0
      %p59 = por %p57, %p58
      %p60 = scmp.ne.s32.totalorder %s52, %s54
      %p61 = scmp.eq.s32.totalorder %s23, 1
      %p62 = por %p60, %p61
      %p63 = scmp.ne.s32.totalorder %s54, %s55
      %p64 = scmp.eq.s32.totalorder %s23, 0
      %p65 = por %p63, %p64
      %p66 = scmp.ne.s32.totalorder %s54, %s55
      %p67 = scmp.eq.s32.totalorder %s24, 1
      %p68 = por %p66, %p67
      %p70 = scmp.ne.s32.totalorder %s55, %s69
      %p71 = scmp.eq.s32.totalorder %s24, 0
      %p72 = por %p70, %p71
      %s74 = sadd.s32 %s73, 1
      %p77 = scmp.eq.s32.totalorder %s18, 1
      %p78 = scmp.ne.s32.totalorder %s73, %s75
      %p79 = scmp.eq.s32.totalorder %s18, 0
      %p80 = por %p78, %p79
      %p81 = scmp.ne.s32.totalorder %s73, %s75
      %p82 = scmp.eq.s32.totalorder %s23, 1
      %p83 = por %p81, %p82
      %p84 = scmp.ne.s32.totalorder %s75, %s76
      %p85 = scmp.eq.s32.totalorder %s23, 0
      %p86 = por %p84, %p85
      %p87 = scmp.ne.s32.totalorder %s75, %s76
      %p88 = scmp.eq.s32.totalorder %s24, 1
      %p89 = por %p87, %p88
      %p91 = scmp.ne.s32.totalorder %s76, %s90
      %p92 = scmp.eq.s32.totalorder %s24, 0
      %p93 = por %p91, %p92
      %s95 = sadd.s32 %s94, 1
      %p98 = scmp.eq.s32.totalorder %s18, 1
      %p99 = scmp.ne.s32.totalorder %s94, %s96
      %p100 = scmp.eq.s32.totalorder %s18, 0
      %p101 = por %p99, %p100
      %p102 = scmp.ne.s32.totalorder %s94, %s96
      %p103 = scmp.eq.s32.totalorder %s23, 1
      %p104 = por %p102, %p103
      %p105 = scmp.ne.s32.totalorder %s96, %s97
      %p106 = scmp.eq.s32.totalorder %s23, 0
      %p107 = por %p105, %p106
      %p108 = scmp.ne.s32.totalorder %s96, %s97
      %p109 = scmp.eq.s32.totalorder %s24, 1
      %p110 = por %p108, %p109
      %p112 = scmp.ne.s32.totalorder %s97, %s111
      %p113 = scmp.eq.s32.totalorder %s24, 0
      %p114 = por %p112, %p113
      %s116 = sadd.s32 %s115, 1
      %p119 = scmp.eq.s32.totalorder %s18, 1
      %p120 = scmp.ne.s32.totalorder %s115, %s117
      %p121 = scmp.eq.s32.totalorder %s18, 0
      %p122 = por %p120, %p121
      %p123 = scmp.ne.s32.totalorder %s115, %s117
      %p124 = scmp.eq.s32.totalorder %s23, 1
      %p125 = por %p123, %p124
      %p126 = scmp.ne.s32.totalorder %s117, %s118
      %p127 = scmp.eq.s32.totalorder %s23, 0
      %p128 = por %p126, %p127
      %p129 = scmp.ne.s32.totalorder %s117, %s118
      %p130 = scmp.eq.s32.totalorder %s24, 1
      %p131 = por %p129, %p130
      %p133 = scmp.ne.s32.totalorder %s118, %s132
      %p134 = scmp.eq.s32.totalorder %s24, 0
      %p135 = por %p133, %p134
      %s136 = ssub.s32 %s18, %s25
      %p137 = scmp.eq.s32.totalorder %s136, 0
      %s139 = sadd.s32 %s138, 1
      %s140 = scalar_select %p137, %s138, %s139
      %p143 = pneg %p137
      %p144 = scmp.eq.s32.totalorder %s18, 1
      %p145 = por %p143, %p144
      %p146 = scmp.ne.s32.totalorder %s138, %s141
      %p147 = scmp.eq.s32.totalorder %s18, 0
      %p148 = por %p146, %p147
      %p149 = scmp.ne.s32.totalorder %s138, %s141
      %p150 = scmp.eq.s32.totalorder %s23, 1
      %p151 = por %p149, %p150
      %p152 = scmp.ne.s32.totalorder %s141, %s142
      %p153 = scmp.eq.s32.totalorder %s23, 0
      %p154 = por %p152, %p153
      %p155 = scmp.ne.s32.totalorder %s141, %s142
      %p156 = scmp.eq.s32.totalorder %s24, 1
      %p157 = por %p155, %p156
      %p159 = scmp.ne.s32.totalorder %s142, %s158
      %p160 = scmp.eq.s32.totalorder %s24, 0
      %p161 = por %p159, %p160
      %p162 = scmp.le.s32.totalorder 1, %s18
      %p163 = scmp.lt.s32.totalorder %s18, 3
      %p164 = pnand %p162, %p163
      %p165 = pneg %p164
      // Predicated region
      $region9: #{tpu_custom_call.1} parent=5 // pred_check
        _
      $region10: #{tpu_custom_call.1} parent=5 // pred_check_branch
        %167 = sbr.rel (%p164) target = $region12
      $region11: #{tpu_custom_call.1} parent=5 // pred_region
        %s168 = ssub.s32 %s18, 1
        // Predicated region
        $region13: #{tpu_custom_call.1} parent=11 // pred_check
          %p169 = pneg %p65
        $region14: #{tpu_custom_call.1} parent=11 // pred_check_branch
          %171 = sbr.rel (%p169) target = $region16
        $region15: #{tpu_custom_call.1} parent=11 // pred_region
          %173 = vsyncadd [#allocation7], 0
          %s174 = sshll.u32 %s1, 4
          %s175 = int_to_ptr.hbm [resolvable:$true] %s174
          %s176 = sshll.u32 [#allocation6], 4
          %s177 = int_to_ptr.vmem [resolvable:$true] %s176
          %182 = dma.hbm_to_vmem [thread:$0]  %s175, 256, %s177, [#allocation7], 64, 64, 4
        $region16: #{tpu_custom_call.1} parent=11 // pred_fallthru
          _
        // Predicated region
        $region17: #{tpu_custom_call.1} parent=11 // pred_check
          %p183 = pneg %p86
        $region18: #{tpu_custom_call.1} parent=11 // pred_check_branch
          %185 = sbr.rel (%p183) target = $region20
        $region19: #{tpu_custom_call.1} parent=11 // pred_region
          _
        $region20: #{tpu_custom_call.1} parent=11 // pred_fallthru
          _
        // Predicated region
        $region21: #{tpu_custom_call.1} parent=11 // pred_check
          %p186 = pneg %p107
        $region22: #{tpu_custom_call.1} parent=11 // pred_check_branch
          %188 = sbr.rel (%p186) target = $region24
        $region23: #{tpu_custom_call.1} parent=11 // pred_region
          %190 = vsyncadd [#allocation7], 0
          %s191 = sshll.u32 %s3, 4
          %s192 = int_to_ptr.hbm [resolvable:$true] %s191
          %s193 = sshll.u32 [#allocation8], 4
          %s194 = int_to_ptr.vmem [resolvable:$true] %s193
          %199 = dma.hbm_to_vmem [thread:$0]  %s192, 256, %s194, [#allocation7], 64, 64, 4
        $region24: #{tpu_custom_call.1} parent=11 // pred_fallthru
          _
        // Predicated region
        $region25: #{tpu_custom_call.1} parent=11 // pred_check
          %p200 = pneg %p128
        $region26: #{tpu_custom_call.1} parent=11 // pred_check_branch
          %202 = sbr.rel (%p200) target = $region28
        $region27: #{tpu_custom_call.1} parent=11 // pred_region
          _
        $region28: #{tpu_custom_call.1} parent=11 // pred_fallthru
          _
      $region12: #{tpu_custom_call.1} parent=5 // pred_fallthru
        _
      %p203 = scmp.lt.s32.totalorder %s18, 2
      // Predicated region
      $region29: #{tpu_custom_call.1} parent=5 // pred_check
        %p204 = pneg %p203
      $region30: #{tpu_custom_call.1} parent=5 // pred_check_branch
        %206 = sbr.rel (%p204) target = $region32
      $region31: #{tpu_custom_call.1} parent=5 // pred_region
        // Predicated region
        $region33: #{tpu_custom_call.1} parent=31 // pred_check
          %p207 = pneg %p38
        $region34: #{tpu_custom_call.1} parent=31 // pred_check_branch
          %209 = sbr.rel (%p207) target = $region36
        $region35: #{tpu_custom_call.1} parent=31 // pred_region
          %s210 = sand.u32 %s28, 1
          %s211 = scalar_lea.sflag [#allocation4], %s210
          %s212 = sand.u32 %s28, 1
          %s213 = smul.addr %s212, 8
          %s214 = scalar_lea.vmem [#allocation3], %s213
          %216 = vsyncadd %s211, 0
          %s217 = smul.addr %s18, 8
          %s218 = scalar_lea.hbm %s0, %s217
          %s220 = sshll.u32 %s218, 4
          %s221 = int_to_ptr.hbm [resolvable:$true] %s220
          %s222 = sshll.u32 %s214, 4
          %s223 = int_to_ptr.vmem [resolvable:$true] %s222
          %225 = dma.hbm_to_vmem [thread:$0]  %s221, 128, %s223, %s211
        $region36: #{tpu_custom_call.1} parent=31 // pred_fallthru
          _
      $region32: #{tpu_custom_call.1} parent=5 // pred_fallthru
        _
      %p226 = scmp.le.s32.totalorder 1, %s18
      %p227 = scmp.lt.s32.totalorder %s18, 3
      %p228 = pnand %p226, %p227
      %p229 = pneg %p228
      // Predicated region
      $region37: #{tpu_custom_call.1} parent=5 // pred_check
        _
      $region38: #{tpu_custom_call.1} parent=5 // pred_check_branch
        %231 = sbr.rel (%p228) target = $region40
      $region39: #{tpu_custom_call.1} parent=5 // pred_region
        %s232 = ssub.s32 %s18, 1
        %s233 = sand.u32 %s31, 1
        %s234 = scalar_lea.sflag [#allocation4], %s233
        %s235 = sand.u32 %s31, 1
        %s236 = smul.addr %s235, 8
        %s237 = scalar_lea.vmem [#allocation3], %s236
        // Predicated region
        $region41: #{tpu_custom_call.1} parent=39 // pred_check
          %p238 = pneg %p44
        $region42: #{tpu_custom_call.1} parent=39 // pred_check_branch
          %240 = sbr.rel (%p238) target = $region44
        $region43: #{tpu_custom_call.1} parent=39 // pred_region
          %242 = dma.done %s234, 128
        $region44: #{tpu_custom_call.1} parent=39 // pred_fallthru
          _
        // Predicated region
        $region45: #{tpu_custom_call.1} parent=39 // pred_check
          %p243 = pneg %p65
        $region46: #{tpu_custom_call.1} parent=39 // pred_check_branch
          %245 = sbr.rel (%p243) target = $region48
        $region47: #{tpu_custom_call.1} parent=39 // pred_region
          %247 = dma.done [#allocation7], 256
        $region48: #{tpu_custom_call.1} parent=39 // pred_fallthru
          _
        // Predicated region
        $region49: #{tpu_custom_call.1} parent=39 // pred_check
          %p248 = pneg %p107
        $region50: #{tpu_custom_call.1} parent=39 // pred_check_branch
          %250 = sbr.rel (%p248) target = $region52
        $region51: #{tpu_custom_call.1} parent=39 // pred_region
          %252 = dma.done [#allocation7], 256
        $region52: #{tpu_custom_call.1} parent=39 // pred_fallthru
          _
        %s253 = sand.u32 %s31, 1
        %s254 = scalar_lea.sflag [#allocation4], %s253
        %s255 = sand.u32 %s31, 1
        %s256 = smul.addr %s255, 8
        %s257 = scalar_lea.vmem [#allocation3], %s256
        %p258 = pneg %p44
        %p259 = pneg %p41
        %p260 = pneg %p65
        %p261 = pneg %p62
        %p262 = pneg %p86
        %p263 = pneg %p83
        %p264 = pneg %p107
        %p265 = pneg %p104
        %p266 = pneg %p128
        %p267 = pneg %p125
        %p268 = pneg %p154
        %p269 = pneg %p151
        %s270 = sand.u32 %s141, 1
        %s271 = scalar_lea.sflag [#allocation5], %s270
        %s272 = sand.u32 %s141, 1
        %s273 = smul.addr %s272, 8
        %s274 = scalar_lea.vmem [#allocation9], %s273
        %v276 = vld [vmem:[%s237] sm:$0xff]
        %v277 = vpack.c.bf16 %v276, %v276
        %v278 = vld [vmem:[#allocation6] sm:$0xf]
        %v279 = vld [vmem:[#allocation6 + $0x4] sm:$0xf]
        %v280 = vld [vmem:[#allocation6 + $0x8] sm:$0xf]
        %v281 = vld [vmem:[#allocation6 + $0xc] sm:$0xf]
        %v282 = vld [vmem:[%s2] sm:$0x1]
        %v284 = vperm.slane %v282, 0
        %v290 = vunpack.c.l.b16 %v278
        %v291 = vunpack.c.l.b16 %v279
        %v292 = vunpack.c.l.b16 %v280
        %v293 = vunpack.c.l.b16 %v281
        %v294 = vpack.c.b16 %v291, %v290
        %v295 = vpack.c.b16 %v293, %v292
        %vm298 = vcmask 261120
        %v300 = vsel %vm298, %v277, 0
        %302 = vmatpush.bf16.msra.mxu0 0
        %303 = vmatpush.bf16.msra.mxu0 0
        %304 = vmatpush.bf16.msra.mxu0 0
        %305 = vmatpush.bf16.msra.mxu0 0
        %306 = vmatpush.bf16.msra.mxu0 0
        %307 = vmatpush.bf16.msra.mxu0 0
        %308 = vmatpush.bf16.msra.mxu0 %v295
        %309 = vmatpush.bf16.msra.mxu0 %v294
        %310 = vmatmul.bf16.gmra.mxu0 %v300
        %v311 = vpop.f32.mrf.mxu0
        %v312 = vadd.f32 %v284, %v311
        %v313 = vpop.f32.mrf.mxu0
        %314 = vdwg.mxu0
        %v315 = vpack.c.bf16 %v312, %v312
        %317 = vrot.lane.b32.xlu0 %v315, 96
        %v318 = vpop.permute.xlu0 %317
        %vm319 = vcmask 64512
        %v321 = vsel %vm319, %v315, 0
        %v324 = vsel %vm319, %v318, 0
        %326 = vmatpush.bf16.xpose.msra.mxu0 0
        %327 = vmatpush.bf16.xpose.msra.mxu0 0
        %328 = vmatpush.bf16.xpose.msra.mxu0 0
        %329 = vmatpush.bf16.xpose.msra.mxu0 0
        %330 = vmatpush.bf16.xpose.msra.mxu0 0
        %331 = vmatpush.bf16.xpose.msra.mxu0 0
        %332 = vmatpush.bf16.xpose.msra.mxu0 0
        %333 = vmatpush.bf16.xpose.msra.mxu0 %v324
        %334 = vmatmul.bf16.gmra.mxu0 %v321
        %v335 = vpop.f32.mrf.mxu0
        %v336 = vadd.f32 0.0, %v335
        %v337 = vpop.f32.mrf.mxu0
        %338 = vdwg.mxu0
        %v339 = vsel %vm319, %v336, -inf
        %340 = vmax.xlane.f32.xlu0 %v339
        %v341 = vpop.xlane.xlu0 %340
        %v342 = vsub.f32 %v336, %v341
        %v343 = vmul.f32 %v342, 1.442695
        %v344 = vpow.pop %v343
        %v345 = vsel %vm319, %v344, 0.0
        %346 = vadd.xlane.f32.xlu0 %v345
        %v347 = vpop.xlane.xlu0 %346
        %v348 = vrcp.pop %v347
        %v349 = vmul.f32 %v344, %v348
        %v350 = vpack.c.bf16 %v349, %v349
        %351 = vrot.lane.b32.xlu0 %v315, 64
        %v352 = vpop.permute.xlu0 %351
        %v354 = vsel %vm319, %v350, 0
        %vm356 = vcmask 1043456
        %v358 = vsel %vm356, %v352, 0
        %360 = vmatpush.bf16.msra.mxu0 0
        %361 = vmatpush.bf16.msra.mxu0 0
        %362 = vmatpush.bf16.msra.mxu0 0
        %363 = vmatpush.bf16.msra.mxu0 0
        %364 = vmatpush.bf16.msra.mxu0 0
        %365 = vmatpush.bf16.msra.mxu0 0
        %366 = vmatpush.bf16.msra.mxu0 0
        %367 = vmatpush.bf16.msra.mxu0 %v358
        %368 = vmatmul.bf16.gmra.mxu0 %v354
        %v369 = vpop.f32.mrf.mxu0
        %v370 = vadd.f32 0.0, %v369
        %v371 = vpop.f32.mrf.mxu0
        %372 = vdwg.mxu0
        %373 = vst.msk [vmem:[#allocation2] sm:$0xff] %vm319, %v370
        %374 = vrot.lane.b32.xlu0 %v315, 120
        %v375 = vpop.permute.xlu0 %374
        %376 = vrot.lane.b32.xlu0 %v315, 88
        %v377 = vpop.permute.xlu0 %376
        %v379 = vsel %vm319, %v375, 0
        %v382 = vsel %vm319, %v377, 0
        %384 = vmatpush.bf16.xpose.msra.mxu0 0
        %385 = vmatpush.bf16.xpose.msra.mxu0 0
        %386 = vmatpush.bf16.xpose.msra.mxu0 0
        %387 = vmatpush.bf16.xpose.msra.mxu0 0
        %388 = vmatpush.bf16.xpose.msra.mxu0 0
        %389 = vmatpush.bf16.xpose.msra.mxu0 0
        %390 = vmatpush.bf16.xpose.msra.mxu0 0
        %391 = vmatpush.bf16.xpose.msra.mxu0 %v382
        %392 = vmatmul.bf16.gmra.mxu0 %v379
        %v393 = vpop.f32.mrf.mxu0
        %v394 = vadd.f32 0.0, %v393
        %v395 = vpop.f32.mrf.mxu0
        %396 = vdwg.mxu0
        %v397 = vsel %vm319, %v394, -inf
        %398 = vmax.xlane.f32.xlu0 %v397
        %v399 = vpop.xlane.xlu0 %398
        %v400 = vsub.f32 %v394, %v399
        %v401 = vmul.f32 %v400, 1.442695
        %v402 = vpow.pop %v401
        %v403 = vsel %vm319, %v402, 0.0
        %404 = vadd.xlane.f32.xlu0 %v403
        %v405 = vpop.xlane.xlu0 %404
        %v406 = vrcp.pop %v405
        %v407 = vmul.f32 %v402, %v406
        %v408 = vpack.c.bf16 %v407, %v407
        %409 = vrot.lane.b32.xlu0 %v315, 56
        %v410 = vpop.permute.xlu0 %409
        %v412 = vsel %vm319, %v408, 0
        %v415 = vsel %vm356, %v410, 0
        %417 = vmatpush.bf16.msra.mxu0 0
        %418 = vmatpush.bf16.msra.mxu0 0
        %419 = vmatpush.bf16.msra.mxu0 0
        %420 = vmatpush.bf16.msra.mxu0 0
        %421 = vmatpush.bf16.msra.mxu0 0
        %422 = vmatpush.bf16.msra.mxu0 0
        %423 = vmatpush.bf16.msra.mxu0 0
        %424 = vmatpush.bf16.msra.mxu0 %v415
        %425 = vmatmul.bf16.gmra.mxu0 %v412
        %v426 = vpop.f32.mrf.mxu0
        %v427 = vadd.f32 0.0, %v426
        %v428 = vpop.f32.mrf.mxu0
        %429 = vdwg.mxu0
        %431 = vrot.lane.b32.xlu0 %v427, 8
        %v432 = vpop.permute.xlu0 %431
        %vm434 = vcmask 130112
        %435 = vst.msk [vmem:[#allocation2] sm:$0xff] %vm434, %v432
        %436 = vrot.lane.b32.xlu0 %v315, 112
        %v437 = vpop.permute.xlu0 %436
        %438 = vrot.lane.b32.xlu0 %v315, 80
        %v439 = vpop.permute.xlu0 %438
        %v441 = vsel %vm319, %v437, 0
        %v444 = vsel %vm319, %v439, 0
        %446 = vmatpush.bf16.xpose.msra.mxu0 0
        %447 = vmatpush.bf16.xpose.msra.mxu0 0
        %448 = vmatpush.bf16.xpose.msra.mxu0 0
        %449 = vmatpush.bf16.xpose.msra.mxu0 0
        %450 = vmatpush.bf16.xpose.msra.mxu0 0
        %451 = vmatpush.bf16.xpose.msra.mxu0 0
        %452 = vmatpush.bf16.xpose.msra.mxu0 0
        %453 = vmatpush.bf16.xpose.msra.mxu0 %v444
        %454 = vmatmul.bf16.gmra.mxu0 %v441
        %v455 = vpop.f32.mrf.mxu0
        %v456 = vadd.f32 0.0, %v455
        %v457 = vpop.f32.mrf.mxu0
        %458 = vdwg.mxu0
        %v459 = vsel %vm319, %v456, -inf
        %460 = vmax.xlane.f32.xlu0 %v459
        %v461 = vpop.xlane.xlu0 %460
        %v462 = vsub.f32 %v456, %v461
        %v463 = vmul.f32 %v462, 1.442695
        %v464 = vpow.pop %v463
        %v465 = vsel %vm319, %v464, 0.0
        %466 = vadd.xlane.f32.xlu0 %v465
        %v467 = vpop.xlane.xlu0 %466
        %v468 = vrcp.pop %v467
        %v469 = vmul.f32 %v464, %v468
        %v470 = vpack.c.bf16 %v469, %v469
        %471 = vrot.lane.b32.xlu0 %v315, 48
        %v472 = vpop.permute.xlu0 %471
        %v474 = vsel %vm319, %v470, 0
        %v477 = vsel %vm356, %v472, 0
        %479 = vmatpush.bf16.msra.mxu0 0
        %480 = vmatpush.bf16.msra.mxu0 0
        %481 = vmatpush.bf16.msra.mxu0 0
        %482 = vmatpush.bf16.msra.mxu0 0
        %483 = vmatpush.bf16.msra.mxu0 0
        %484 = vmatpush.bf16.msra.mxu0 0
        %485 = vmatpush.bf16.msra.mxu0 0
        %486 = vmatpush.bf16.msra.mxu0 %v477
        %487 = vmatmul.bf16.gmra.mxu0 %v474
        %v488 = vpop.f32.mrf.mxu0
        %v489 = vadd.f32 0.0, %v488
        %v490 = vpop.f32.mrf.mxu0
        %491 = vdwg.mxu0
        %493 = vrot.lane.b32.xlu0 %v489, 16
        %v494 = vpop.permute.xlu0 %493
        %vm496 = vcmask 195712
        %497 = vst.msk [vmem:[#allocation2] sm:$0xff] %vm496, %v494
        %498 = vrot.lane.b32.xlu0 %v315, 104
        %v499 = vpop.permute.xlu0 %498
        %500 = vrot.lane.b32.xlu0 %v315, 72
        %v501 = vpop.permute.xlu0 %500
        %v503 = vsel %vm319, %v499, 0
        %v506 = vsel %vm319, %v501, 0
        %508 = vmatpush.bf16.xpose.msra.mxu0 0
        %509 = vmatpush.bf16.xpose.msra.mxu0 0
        %510 = vmatpush.bf16.xpose.msra.mxu0 0
        %511 = vmatpush.bf16.xpose.msra.mxu0 0
        %512 = vmatpush.bf16.xpose.msra.mxu0 0
        %513 = vmatpush.bf16.xpose.msra.mxu0 0
        %514 = vmatpush.bf16.xpose.msra.mxu0 0
        %515 = vmatpush.bf16.xpose.msra.mxu0 %v506
        %516 = vmatmul.bf16.gmra.mxu0 %v503
        %v517 = vpop.f32.mrf.mxu0
        %v518 = vadd.f32 0.0, %v517
        %v519 = vpop.f32.mrf.mxu0
        %520 = vdwg.mxu0
        %v521 = vsel %vm319, %v518, -inf
        %522 = vmax.xlane.f32.xlu0 %v521
        %v523 = vpop.xlane.xlu0 %522
        %v524 = vsub.f32 %v518, %v523
        %v525 = vmul.f32 %v524, 1.442695
        %v526 = vpow.pop %v525
        %v527 = vsel %vm319, %v526, 0.0
        %528 = vadd.xlane.f32.xlu0 %v527
        %v529 = vpop.xlane.xlu0 %528
        %v530 = vrcp.pop %v529
        %v531 = vmul.f32 %v526, %v530
        %v532 = vpack.c.bf16 %v531, %v531
        %533 = vrot.lane.b32.xlu0 %v315, 40
        %v534 = vpop.permute.xlu0 %533
        %v536 = vsel %vm319, %v532, 0
        %v539 = vsel %vm356, %v534, 0
        %541 = vmatpush.bf16.msra.mxu0 0
        %542 = vmatpush.bf16.msra.mxu0 0
        %543 = vmatpush.bf16.msra.mxu0 0
        %544 = vmatpush.bf16.msra.mxu0 0
        %545 = vmatpush.bf16.msra.mxu0 0
        %546 = vmatpush.bf16.msra.mxu0 0
        %547 = vmatpush.bf16.msra.mxu0 0
        %548 = vmatpush.bf16.msra.mxu0 %v539
        %549 = vmatmul.bf16.gmra.mxu0 %v536
        %v550 = vpop.f32.mrf.mxu0
        %v551 = vadd.f32 0.0, %v550
        %v552 = vpop.f32.mrf.mxu0
        %553 = vdwg.mxu0
        %555 = vrot.lane.b32.xlu0 %v551, 24
        %v556 = vpop.permute.xlu0 %555
        %vm558 = vcmask 261312
        %559 = vst.msk [vmem:[#allocation2] sm:$0xff] %vm558, %v556
        %v560 = vld [vmem:[#allocation2] sm:$0xff]
        %v561 = vpack.c.bf16 %v560, %v560
        %v562 = vld [vmem:[#allocation8] sm:$0xf]
        %v563 = vld [vmem:[#allocation8 + $0x4] sm:$0xf]
        %v564 = vld [vmem:[#allocation8 + $0x8] sm:$0xf]
        %v565 = vld [vmem:[#allocation8 + $0xc] sm:$0xf]
        %v566 = vld [vmem:[%s4] sm:$0x1]
        %v568 = vperm.slane %v566, 0
        %v574 = vunpack.c.l.b16 %v562
        %v575 = vunpack.c.l.b16 %v563
        %v576 = vunpack.c.l.b16 %v564
        %v577 = vunpack.c.l.b16 %v565
        %v578 = vpack.c.b16 %v575, %v574
        %v579 = vpack.c.b16 %v577, %v576
        %v583 = vsel %vm298, %v561, 0
        %585 = vmatpush.bf16.msra.mxu0 0
        %586 = vmatpush.bf16.msra.mxu0 0
        %587 = vmatpush.bf16.msra.mxu0 0
        %588 = vmatpush.bf16.msra.mxu0 0
        %589 = vmatpush.bf16.msra.mxu0 0
        %590 = vmatpush.bf16.msra.mxu0 0
        %591 = vmatpush.bf16.msra.mxu0 %v579
        %592 = vmatpush.bf16.msra.mxu0 %v578
        %593 = vmatmul.bf16.gmra.mxu0 %v583
        %v594 = vpop.f32.mrf.mxu0
        %v595 = vadd.f32 %v568, %v594
        %v596 = vpop.f32.mrf.mxu0
        %597 = vdwg.mxu0
        %598 = vst.msk [vmem:[%s274] sm:$0xff] %vm298, %v595
        %s599 = sand.u32 %s141, 1
        %s600 = scalar_lea.sflag [#allocation5], %s599
        %s601 = sand.u32 %s141, 1
        %s602 = smul.addr %s601, 8
        %s603 = scalar_lea.vmem [#allocation9], %s602
        // Predicated region
        $region53: #{tpu_custom_call.1} parent=39 // pred_check
          %p604 = pneg %p151
        $region54: #{tpu_custom_call.1} parent=39 // pred_check_branch
          %606 = sbr.rel (%p604) target = $region56
        $region55: #{tpu_custom_call.1} parent=39 // pred_region
          %608 = vsyncadd %s600, 0
          %s609 = smul.addr %s23, 8
          %s610 = scalar_lea.hbm %s5, %s609
          %s612 = sshll.u32 %s603, 4
          %s613 = int_to_ptr.vmem [resolvable:$true] %s612
          %s614 = sshll.u32 %s610, 4
          %s615 = int_to_ptr.hbm [resolvable:$true] %s614
          %617 = dma.vmem_to_hbm [thread:$0]  %s613, 128, %s615, %s600
        $region56: #{tpu_custom_call.1} parent=39 // pred_fallthru
          _
      $region40: #{tpu_custom_call.1} parent=5 // pred_fallthru
        _
      %p618 = scmp.le.s32.totalorder 2, %s18
      // Predicated region
      $region57: #{tpu_custom_call.1} parent=5 // pred_check
        %p619 = pneg %p618
      $region58: #{tpu_custom_call.1} parent=5 // pred_check_branch
        %621 = sbr.rel (%p619) target = $region60
      $region59: #{tpu_custom_call.1} parent=5 // pred_region
        %s622 = ssub.s32 %s18, 2
        // Predicated region
        $region61: #{tpu_custom_call.1} parent=59 // pred_check
          %p623 = pneg %p157
        $region62: #{tpu_custom_call.1} parent=59 // pred_check_branch
          %625 = sbr.rel (%p623) target = $region64
        $region63: #{tpu_custom_call.1} parent=59 // pred_region
          %s626 = sand.u32 %s142, 1
          %s627 = scalar_lea.sflag [#allocation5], %s626
          %s628 = sand.u32 %s142, 1
          %s629 = smul.addr %s628, 8
          %s630 = scalar_lea.vmem [#allocation9], %s629
          %632 = dma.done %s627, 128
        $region64: #{tpu_custom_call.1} parent=59 // pred_fallthru
          _
      $region60: #{tpu_custom_call.1} parent=5 // pred_fallthru
        _
    $region6: #{tpu_custom_call.1} parent=1 // loop_footer
      %s22 = sadd.s32 1, %s18
    $region7: #{tpu_custom_call.1} parent=1 // loop_footer_branch
      %17 = sbr.rel target = $region3
    $region8: #{tpu_custom_call.1} parent=1 // loop_exit
      _
    %633 = vsyncpa [#allocation4], 1
    %s634 = scalar_lea.sflag [#allocation4], 1
    %635 = vsyncpa %s634, 1
    %636 = vsyncpa [#allocation7], 1
    %637 = vsyncpa [#allocation5], 1
    %s638 = scalar_lea.sflag [#allocation5], 1
    %639 = vsyncpa %s638, 1

</llo_original>
